<compile_context>
chip_gen: v7x
topology: tpu7x:2x2x1
jax: 0.10.0
libtpu: 0.0.40
codegen_flags: <defaults>
</compile_context>

<pallas_src>
import jax
import jax.numpy as jnp
from jax.experimental import pallas as pl
from jax.experimental.pallas import tpu as pltpu


def _round_up(v, m):
    return ((v + m - 1) // m) * m


def _make_ring_loss_kernel(valid_rows_in_last_block):
    """Builds the kernel body.

    valid_rows_in_last_block: None if every block is full, otherwise the number
    of real rows in the final (partial) block (static Python int).
    """

    def compute(x_ref, out_ref, valid_rows):
        # astype is expected to fuse into the square/reduce (no-op for f32 inputs).
        x = x_ref[...].astype(jnp.float32)
        s = jnp.sum(x * x, axis=1, keepdims=True)          # (tile_n, 1) lane reduce
        if valid_rows is not None:
            # Tail rows of the last block were never DMA'd (stale VMEM): select
            # them away BEFORE sqrt / the row reduce so garbage (even inf/nan)
            # cannot leak into the partials.
            row = jax.lax.broadcasted_iota(jnp.int32, s.shape, 0)
            s = jnp.where(row < valid_rows, s, 0.0)
        sum_sq = jnp.sum(s)                                 # sum_i ||x_i||^2
        sum_nrm = jnp.sum(jnp.sqrt(s))                      # sum_i ||x_i||  (EUP sqrt)
        lane = jax.lax.broadcasted_iota(jnp.int32, (1, 128), 1)
        out_ref[...] = jnp.where(lane == 0, sum_sq,
                                 jnp.where(lane == 1, sum_nrm, 0.0))

    if valid_rows_in_last_block is None:
        def kernel(x_ref, out_ref):
            compute(x_ref, out_ref, None)
    else:
        def kernel(x_ref, out_ref):
            i = pl.program_id(0)
            last = pl.num_programs(0) - 1

            @pl.when(i != last)
            def _():
                compute(x_ref, out_ref, None)       # steady state: no masking at all

            @pl.when(i == last)
            def _():
                compute(x_ref, out_ref, valid_rows_in_last_block)

    return kernel


def ring_loss(x, radius, weight_ring=1.0, tile_n=None):
    """Ring loss forward: mean((||x_i||_2 - radius)^2) * weight_ring.

    x: (N, D) float array (f32 or bf16); radius: shape () or (1,) parameter.
    """
    n, d = x.shape
    itemsize = jnp.dtype(x.dtype).itemsize

    # --- batch-tile sizing (bytes-based; no D padding, no N padding) ---------
    if tile_n is None:
        # ~8 MiB of f32 working set per block; cap rows so the (tile_n, 1)
        # per-row-norm intermediates stay cheap in VMEM when D is small.
        tile_n = (8 * 1024 * 1024) // (d * 4)
        tile_n = max(8, min(8192, tile_n))
    if n <= 8:
        tile_n = n                       # single block equal to the full batch dim
    else:
        tile_n = max(8, (min(int(tile_n), _round_up(n, 8)) // 8) * 8)
        if pl.cdiv(n, tile_n) < 2:
            # Keep >= 2 blocks so the "parallel" grid axis can shard across both
            # TensorCores on v7x (neutral on v5e/v6e).
            tile_n = max(8, _round_up(pl.cdiv(n, 2), 8))
    num_blocks = pl.cdiv(n, tile_n)
    rem = n % tile_n
    valid_last = rem if rem != 0 else None

    kernel = _make_ring_loss_kernel(valid_last)

    partial_slabs = pl.pallas_call(
        kernel,
        out_shape=jax.ShapeDtypeStruct((1, num_blocks * 128), jnp.float32),
        grid=(num_blocks,),
        in_specs=[pl.BlockSpec((tile_n, d), lambda i: (i, 0))],   # D == full dim: legal
        out_specs=pl.BlockSpec((1, 128), lambda i: (0, i)),       # lane-dense partial slab
        compiler_params=pltpu.CompilerParams(
            dimension_semantics=("parallel",),
            vmem_limit_bytes=40 * 1024 * 1024,   # >= v5e's 16 MiB default, < v7x's 64 MiB
        ),
        cost_estimate=pl.CostEstimate(
            flops=3 * n * d + 4 * n,
            transcendentals=n,
            bytes_accessed=n * d * itemsize + num_blocks * 128 * 4,
        ),
    )(x)

    slabs = partial_slabs.reshape(num_blocks, 128)
    sum_sq = jnp.sum(slabs[:, 0])        # sum_i ||x_i||^2
    sum_nrm = jnp.sum(slabs[:, 1])       # sum_i ||x_i||

    r = jnp.asarray(radius, jnp.float32).reshape(())   # accepts () or (1,) radius
    total = sum_sq - 2.0 * r * sum_nrm + jnp.float32(n) * r * r   # == sum_i (||x_i||-r)^2
    return (total / jnp.float32(n)) * jnp.float32(weight_ring)


if __name__ == "__main__":
    key = jax.random.PRNGKey(0)
    radius = jnp.ones((1,), dtype=jnp.float32)   # matches nn.Parameter(torch.ones(1))
    weight_ring = 1.0

    # Small shape consistent with the module: batch of 8 feature vectors, dim 32.
    x = jax.random.normal(key, (8, 32), dtype=jnp.float32)
    loss = jax.block_until_ready(ring_loss(x, radius, weight_ring))
    ref = jnp.mean((jnp.linalg.norm(x, axis=1) - radius[0]) ** 2) * weight_ring
    assert jnp.allclose(loss, ref, rtol=1e-5, atol=1e-5), (loss, ref)

    # Multi-block path: grid > 1 with a partial last block masked in-kernel.
    x2 = jax.random.normal(jax.random.PRNGKey(1), (50, 32), dtype=jnp.float32)
    loss2 = jax.block_until_ready(ring_loss(x2, radius, weight_ring, tile_n=16))
    ref2 = jnp.mean((jnp.linalg.norm(x2, axis=1) - radius[0]) ** 2) * weight_ring
    assert jnp.allclose(loss2, ref2, rtol=1e-5, atol=1e-5), (loss2, ref2)

    print("KERNEL_OK")
</pallas_src>

<mosaic_0001>
module attributes {stable_mosaic.version = 11 : i64} {
  func.func @kernel(%arg0: i32, %arg1: memref<8x32xf32, #tpu.memory_space<vmem>>, %arg2: memref<1x128xf32, #tpu.memory_space<vmem>>) attributes {dimension_semantics = [#tpu.dimension_semantics<parallel>], iteration_bounds = array<i64: 1>, scalar_prefetch = 0 : i64, scratch_operands = 0 : i64, tpu.core_type = #tpu.core_type<tc>, window_params = [{transform_indices = @transform_0, window_bounds = array<i64: 8, 32>}, {transform_indices = @transform_1, window_bounds = array<i64: 1, 128>}]} {
    %c0 = arith.constant 0 : index
    %c0_0 = arith.constant 0 : index
    %0 = vector.load %arg1[%c0, %c0_0] : memref<8x32xf32, #tpu.memory_space<vmem>>, vector<8x32xf32>
    %1 = arith.mulf %0, %0 : vector<8x32xf32>
    %cst = arith.constant dense<0.000000e+00> : vector<8xf32>
    %2 = vector.multi_reduction <add>, %1, %cst [1] : vector<8x32xf32> to vector<8xf32>
    %3 = vector.shape_cast %2 : vector<8xf32> to vector<8x1xf32>
    %4 = vector.shape_cast %3 : vector<8x1xf32> to vector<1x8x1xf32>
    %cst_1 = arith.constant dense<0.000000e+00> : vector<1xf32>
    %5 = vector.multi_reduction <add>, %4, %cst_1 [1, 2] : vector<1x8x1xf32> to vector<1xf32>
    %6 = vector.shape_cast %5 : vector<1xf32> to vector<1x1x1xf32>
    %7 = vector.extract %6[0, 0, 0] : f32 from vector<1x1x1xf32>
    %8 = math.sqrt %3 : vector<8x1xf32>
    %9 = vector.shape_cast %8 : vector<8x1xf32> to vector<1x8x1xf32>
    %cst_2 = arith.constant dense<0.000000e+00> : vector<1xf32>
    %10 = vector.multi_reduction <add>, %9, %cst_2 [1, 2] : vector<1x8x1xf32> to vector<1xf32>
    %11 = vector.shape_cast %10 : vector<1xf32> to vector<1x1x1xf32>
    %12 = vector.extract %11[0, 0, 0] : f32 from vector<1x1x1xf32>
    %13 = tpu.iota {dimensions = array<i32: 1>} : vector<1x128xi32>
    %c0_i32 = arith.constant 0 : i32
    %14 = vector.broadcast %c0_i32 : i32 to vector<1x128xi32>
    %15 = arith.cmpi eq, %13, %14 : vector<1x128xi32>
    %c1_i32 = arith.constant 1 : i32
    %16 = vector.broadcast %c1_i32 : i32 to vector<1x128xi32>
    %17 = arith.cmpi eq, %13, %16 : vector<1x128xi32>
    %cst_3 = arith.constant 0.000000e+00 : f32
    %18 = vector.broadcast %12 : f32 to vector<1x128xf32>
    %19 = vector.broadcast %cst_3 : f32 to vector<1x128xf32>
    %20 = arith.select %17, %18, %19 : vector<1x128xi1>, vector<1x128xf32>
    %21 = vector.broadcast %7 : f32 to vector<1x128xf32>
    %22 = arith.select %15, %21, %20 : vector<1x128xi1>, vector<1x128xf32>
    %c0_4 = arith.constant 0 : index
    %c0_5 = arith.constant 0 : index
    %23 = vector.load %arg2[%c0_4, %c0_5] : memref<1x128xf32, #tpu.memory_space<vmem>>, vector<1x128xf32>
    tpu.vector_store %arg2[%c0_4, %c0_5], %22 {strides = array<i32>} : memref<1x128xf32, #tpu.memory_space<vmem>>, vector<1x128xf32>,
    return
  }
  func.func @transform_0(%arg0: i32) -> (i32, i32) {
    %c0_i32 = arith.constant 0 : i32
    %c0_i32_0 = arith.constant 0 : i32
    return %arg0, %c0_i32 : i32, i32
  }
  func.func @transform_1(%arg0: i32) -> (i32, i32) {
    %c0_i32 = arith.constant 0 : i32
    %c0_i32_0 = arith.constant 0 : i32
    return %c0_i32, %arg0 : i32, i32
  }
}

</mosaic_0001>

<llo_original>
// kernel: tpu_custom_call.1
$region0: #{tpu_custom_call.1}
  #allocation0 [shape = 'u32[]', space=smem, size = 0x4, offset = 0x4, fixed_abs, tag = 'smem constant byte address 0x4 - core index']
  #allocation1 [shape = 'u32[144,128]{1,0:T(1,128)}', space=vmem, size = 0x12000, scoped, tag = 'internal scratch']
  %s0 = inlined_call_operand.hbm [shape: f32[8,32], index: 0, kind: input, shape index: {}]
  %s1 = inlined_call_operand.hbm [shape: f32[1,128], index: 1, kind: output, shape index: {}]
  %s2 = sld [smem:[#allocation0]]
  $region18: #{tpu_custom_call.1} parent=0
    _
  %s4 = ssub.s32 1, %s2
  %s5 = scalar_select 0, %s4, %s2
  $region1: #{tpu_custom_call.1} parent=0
    #allocation2 [shape = 'u8[4096]{0}', space=vmem, size = 0x1000, scoped, tag = 'input window, operand 0, single buffered']
    #allocation3 [shape = 's32[1]{0}', space=sflag, size = 0x4, scoped, tag = 'scoped memory for tpu_custom_call.1']
    #allocation4 [shape = 's32[1]{0}', space=sflag, size = 0x4, scoped, tag = 'scoped memory for tpu_custom_call.1']
    #allocation5 [shape = 'u8[512]{0}', space=vmem, size = 0x400, scoped, tag = 'output window, operand 0, single buffered']
    %6 = vsyncpa [#allocation3], 0
    %7 = vsyncpa [#allocation4], 0
    // Predicated region
    $region2: #{tpu_custom_call.1} parent=1 // pred_check
      _
    $region3: #{tpu_custom_call.1} parent=1 // pred_check_branch
      %9 = sbr.rel (0) target = $region5
    $region4: #{tpu_custom_call.1} parent=1 // pred_region
      %s11 = ssub.s32 128, 128
      %12 = vsyncadd [#allocation3], %s11
      %s14 = sshll.u32 [#allocation2], 4
      %s15 = int_to_ptr.vmem [resolvable:$true] %s14
      %17 = dma.hbm_to_vmem [thread:$0]  %s0, 128, %s15, [#allocation3]
    $region5: #{tpu_custom_call.1} parent=1 // pred_fallthru
      _
    // Predicated region
    $region6: #{tpu_custom_call.1} parent=1 // pred_check
      _
    $region7: #{tpu_custom_call.1} parent=1 // pred_check_branch
      %19 = sbr.rel (0) target = $region9
    $region8: #{tpu_custom_call.1} parent=1 // pred_region
      %20 = dma.done [#allocation3], 128
    $region9: #{tpu_custom_call.1} parent=1 // pred_fallthru
      _
    %v21 = vld [vmem:[#allocation2] sm:$0xff]
    %v22 = vmul.f32 %v21, %v21
    %vm23 = vcmask 261120
    %v24 = vsel %vm23, %v22, 0.0
    %25 = vadd.xlane.f32.xlu0 %v24
    %v26 = vpop.xlane.xlu0 %25
    %vm27 = vcmask 7168
    %v28 = vsel %vm27, %v26, 0.0
    %29 = vadd.xlane.f32.xlu0 %v28
    %v30 = vpop.xlane.xlu0 %29
    %v31 = vrot.slane %v30, 4
    %v32 = vadd.f32 %v30, %v31
    %v33 = vrot.slane %v32, 2
    %v34 = vadd.f32 %v32, %v33
    %v35 = vrot.slane %v34, 1
    %v36 = vadd.f32 %v34, %v35
    %s37 = vtos %v36
    %v38 = vrsqrt.pop %v26
    %v39 = vmul.f32 %v26, %v38
    %vm40 = vcmp.eq.f32.partialorder %v26, inf
    %v41 = vsel %vm40, %v26, %v39
    %vm42 = vcmp.eq.f32.partialorder %v26, 0.0
    %v43 = vand.u32 %v26, 2147483648
    %v44 = vsel %vm42, %v43, %v41
    %v45 = vsel %vm27, %v44, 0.0
    %46 = vadd.xlane.f32.xlu0 %v45
    %v47 = vpop.xlane.xlu0 %46
    %v48 = vrot.slane %v47, 4
    %v49 = vadd.f32 %v47, %v48
    %v50 = vrot.slane %v49, 2
    %v51 = vadd.f32 %v49, %v50
    %v52 = vrot.slane %v51, 1
    %v53 = vadd.f32 %v51, %v52
    %s54 = vtos %v53
    %v55 = vlaneseq
    %v56 = vand.u32 %v55, 127
    %vm57 = vcmp.eq.s32.totalorder %v56, 0
    %vm58 = vcmp.eq.s32.totalorder %v56, 1
    %v59 = vstv %s54
    %v60 = vsel %vm58, %v59, 0.0
    %v61 = vstv %s37
    %v62 = vsel %vm57, %v61, %v60
    %63 = vst [vmem:[#allocation5] sm:$0x1] %v62
    // Predicated region
    $region10: #{tpu_custom_call.1} parent=1 // pred_check
      _
    $region11: #{tpu_custom_call.1} parent=1 // pred_check_branch
      %65 = sbr.rel (0) target = $region13
    $region12: #{tpu_custom_call.1} parent=1 // pred_region
      %s67 = ssub.s32 16, 16
      %68 = vsyncadd [#allocation4], %s67
      %s70 = sshll.u32 [#allocation5], 4
      %s71 = int_to_ptr.vmem [resolvable:$true] %s70
      %73 = dma.vmem_to_hbm [thread:$0]  %s71, 16, %s1, [#allocation4]
    $region13: #{tpu_custom_call.1} parent=1 // pred_fallthru
      _
    // Predicated region
    $region14: #{tpu_custom_call.1} parent=1 // pred_check
      _
    $region15: #{tpu_custom_call.1} parent=1 // pred_check_branch
      %75 = sbr.rel (0) target = $region17
    $region16: #{tpu_custom_call.1} parent=1 // pred_region
      %76 = dma.done [#allocation4], 16
    $region17: #{tpu_custom_call.1} parent=1 // pred_fallthru
      _
    %77 = vsyncpa [#allocation3], 1
    %78 = vsyncpa [#allocation4], 1

</llo_original>
